<compile_context>
chip_gen: v5e
topology: v5e:2x2
jax: 0.10.0
libtpu: 0.0.40
codegen_flags: <defaults>
</compile_context>

<pallas_src>
import functools
import math

import jax
import jax.numpy as jnp
from jax.experimental import pallas as pl
from jax.experimental.pallas import tpu as pltpu


_LANE = 128
_SUBLANE = 8
_DEFAULT_TILE_BYTES = 4 * 1024 * 1024  # byte budget per (half-)input tile


# ---------------------------------------------------------------------------
# Kernel (shared by both paths): gate/act halves arrive as separate tiles.
# ---------------------------------------------------------------------------
def _glu_kernel(gate_ref, act_ref, o_ref, *, activation):
    gate = gate_ref[...].astype(jnp.float32)
    act = activation(act_ref[...].astype(jnp.float32))
    o_ref[...] = (gate * act).astype(o_ref.dtype)


# ---------------------------------------------------------------------------
# Tiling helpers
# ---------------------------------------------------------------------------
def _largest_divisor_leq(n, cap):
    cap = max(1, min(cap, n))
    for d in range(cap, 0, -1):
        if n % d == 0:
            return d
    return 1


def _pick_tiles(rows, h, itemsize, tile_bytes):
    """Pick (row_tile, col_tile) for lane-aligned H (h % 128 == 0)."""
    units = h // _LANE
    # Prefer full-width columns (lane-dense output); only split columns when H
    # is so wide that even 8 rows would blow the byte budget.
    max_units = max(1, tile_bytes // (_SUBLANE * itemsize * _LANE))
    tc = _LANE * _largest_divisor_leq(units, max_units)
    tr_cap = (tile_bytes // max(1, tc * itemsize)) // _SUBLANE * _SUBLANE
    tr_cap = max(_SUBLANE, tr_cap)
    tr = rows if rows <= tr_cap else tr_cap
    return tr, tc


def _vmem_limit(tile_elems, itemsize):
    # 2 input halves + 1 output, double buffered, + 50% headroom.
    ws = 9 * tile_elems * itemsize
    return int(min(64 * 2**20, max(32 * 2**20, ws)))


# ---------------------------------------------------------------------------
# Wrapper
# ---------------------------------------------------------------------------
def glu_activation(x, base_activation=jax.nn.silu, *, tile_bytes_cap=_DEFAULT_TILE_BYTES):
    """Pallas equivalent of GLUActivation(base_activation)(x).

    x: array of shape (..., 2*H). Returns array of shape (..., H).
    """
    *lead, two_h = x.shape
    if two_h <= 0 or two_h % 2 != 0:
        raise ValueError("last dim must be even and positive for GLU chunk")
    h = two_h // 2

    rows = math.prod(lead) if lead else 1
    if rows == 0:
        return jnp.zeros((*lead, h), dtype=x.dtype)

    x2d = x.reshape(rows, two_h)
    itemsize = jnp.dtype(x.dtype).itemsize
    kernel = functools.partial(_glu_kernel, activation=base_activation)

    if h % _LANE == 0:
        # ---- fast path: two lane-aligned views of the same HBM array -------
        tr, tc = _pick_tiles(rows, h, itemsize, tile_bytes_cap)
        nr = pl.cdiv(rows, tr)
        nc = h // tc  # exact: tc divides h by construction

        out2d = pl.pallas_call(
            kernel,
            out_shape=jax.ShapeDtypeStruct((rows, h), x.dtype),
            grid_spec=pltpu.PrefetchScalarGridSpec(
                num_scalar_prefetch=0,
                grid=(nr, nc),
                in_specs=[
                    # gate half: columns [0, h)
                    pl.BlockSpec((tr, tc), lambda i, j: (i, j)),
                    # act half: columns [h, 2h) -> block offset of nc columns
                    pl.BlockSpec((tr, tc), lambda i, j: (i, j + nc)),
                ],
                out_specs=pl.BlockSpec((tr, tc), lambda i, j: (i, j)),
            ),
            compiler_params=pltpu.CompilerParams(
                dimension_semantics=("parallel", "parallel"),
                vmem_limit_bytes=_vmem_limit(tr * tc, itemsize),
            ),
        )(x2d, x2d)
    else:
        # ---- fallback: H not lane-aligned --------------------------------
        # Split the halves once in XLA (rare path; one extra HBM copy) so every
        # Pallas block uses full-width, trivially legal shapes.
        gate2d = x2d[:, :h]
        act2d = x2d[:, h:]

        tr_cap = (tile_bytes_cap // max(1, h * itemsize)) // _SUBLANE * _SUBLANE
        tr_cap = max(_SUBLANE, tr_cap)
        tr = rows if rows <= tr_cap else tr_cap
        nr = pl.cdiv(rows, tr)

        out2d = pl.pallas_call(
            kernel,
            out_shape=jax.ShapeDtypeStruct((rows, h), x.dtype),
            grid_spec=pltpu.PrefetchScalarGridSpec(
                num_scalar_prefetch=0,
                grid=(nr,),
                in_specs=[
                    pl.BlockSpec((tr, h), lambda i: (i, 0)),
                    pl.BlockSpec((tr, h), lambda i: (i, 0)),
                ],
                out_specs=pl.BlockSpec((tr, h), lambda i: (i, 0)),
            ),
            compiler_params=pltpu.CompilerParams(
                dimension_semantics=("parallel",),
                vmem_limit_bytes=_vmem_limit(tr * h, itemsize),
            ),
        )(gate2d, act2d)

    return out2d.reshape(*lead, h)


# ---------------------------------------------------------------------------
# Reference (pure JAX) for correctness check
# ---------------------------------------------------------------------------
def glu_reference(x, base_activation=jax.nn.silu):
    a, b = jnp.split(x, 2, axis=-1)
    return (a.astype(jnp.float32) * base_activation(b.astype(jnp.float32))).astype(x.dtype)


if __name__ == "__main__":
    key = jax.random.PRNGKey(0)
    k1, k2, k3, k4, k5 = jax.random.split(key, 5)

    # 1) Primary test: batch=2, seq=8, hidden(2*H)=256 -> output H=128.
    x = jax.random.normal(k1, (2, 8, 256), dtype=jnp.float32)
    out = jax.block_until_ready(glu_activation(x))
    ref = glu_reference(x)
    assert out.shape == (2, 8, 128), out.shape
    assert jnp.allclose(out, ref, atol=1e-5, rtol=1e-5), "mismatch vs reference"

    # 2) Multi-step row grid with a partial edge block (tiny tile cap to force it).
    x2 = jax.random.normal(k2, (4, 260, 256), dtype=jnp.float32)  # rows=1040
    out2 = jax.block_until_ready(glu_activation(x2, tile_bytes_cap=128 * 1024))
    ref2 = glu_reference(x2)
    assert out2.shape == (4, 260, 128), out2.shape
    assert jnp.allclose(out2, ref2, atol=1e-5, rtol=1e-5), "mismatch (row-tiled)"

    # 3) Column grid (wide H) exercising the offset index_map on the act half.
    x3 = jax.random.normal(k3, (8, 8192), dtype=jnp.float32)  # H=4096
    out3 = jax.block_until_ready(glu_activation(x3, tile_bytes_cap=64 * 1024))
    ref3 = glu_reference(x3)
    assert out3.shape == (8, 4096), out3.shape
    assert jnp.allclose(out3, ref3, atol=1e-5, rtol=1e-5), "mismatch (col-tiled)"

    # 4) Fallback path: H=60 (not a multiple of 128).
    x4 = jax.random.normal(k4, (2, 8, 120), dtype=jnp.float32)
    out4 = jax.block_until_ready(glu_activation(x4))
    ref4 = glu_reference(x4)
    assert out4.shape == (2, 8, 60), out4.shape
    assert jnp.allclose(out4, ref4, atol=1e-5, rtol=1e-5), "mismatch (fallback)"

    # 5) bf16 input (activation computed in f32, result cast back).
    x5 = jax.random.normal(k5, (2, 8, 256), dtype=jnp.bfloat16)
    out5 = jax.block_until_ready(glu_activation(x5))
    ref5 = glu_reference(x5)
    assert out5.shape == (2, 8, 128), out5.shape
    assert jnp.allclose(out5.astype(jnp.float32), ref5.astype(jnp.float32),
                        atol=2e-2, rtol=2e-2), "mismatch (bf16)"

    print("KERNEL_OK")
</pallas_src>

<mosaic_0001>
module attributes {stable_mosaic.version = 11 : i64} {
  func.func @_glu_kernel(%arg0: i32, %arg1: i32, %arg2: memref<16x128xf32, #tpu.memory_space<vmem>>, %arg3: memref<16x128xf32, #tpu.memory_space<vmem>>, %arg4: memref<16x128xf32, #tpu.memory_space<vmem>>) attributes {dimension_semantics = [#tpu.dimension_semantics<parallel>, #tpu.dimension_semantics<parallel>], iteration_bounds = array<i64: 1, 1>, scalar_prefetch = 0 : i64, scratch_operands = 0 : i64, tpu.core_type = #tpu.core_type<tc>, window_params = [{transform_indices = @transform_0, window_bounds = array<i64: 16, 128>}, {transform_indices = @transform_1, window_bounds = array<i64: 16, 128>}, {transform_indices = @transform_2, window_bounds = array<i64: 16, 128>}]} {
    %c0 = arith.constant 0 : index
    %c0_0 = arith.constant 0 : index
    %0 = vector.load %arg2[%c0, %c0_0] : memref<16x128xf32, #tpu.memory_space<vmem>>, vector<16x128xf32>
    %c0_1 = arith.constant 0 : index
    %c0_2 = arith.constant 0 : index
    %1 = vector.load %arg3[%c0_1, %c0_2] : memref<16x128xf32, #tpu.memory_space<vmem>>, vector<16x128xf32>
    %2 = arith.negf %1 : vector<16x128xf32>
    %3 = math.exp %2 : vector<16x128xf32>
    %cst = arith.constant 1.000000e+00 : f32
    %4 = vector.broadcast %cst : f32 to vector<16x128xf32>
    %5 = arith.addf %4, %3 : vector<16x128xf32>
    %6 = arith.divf %4, %5 : vector<16x128xf32>
    %7 = arith.mulf %1, %6 : vector<16x128xf32>
    %8 = arith.mulf %0, %7 : vector<16x128xf32>
    %c0_3 = arith.constant 0 : index
    %c0_4 = arith.constant 0 : index
    %9 = vector.load %arg4[%c0_3, %c0_4] : memref<16x128xf32, #tpu.memory_space<vmem>>, vector<16x128xf32>
    tpu.vector_store %arg4[%c0_3, %c0_4], %8 {strides = array<i32>} : memref<16x128xf32, #tpu.memory_space<vmem>>, vector<16x128xf32>,
    return
  }
  func.func @transform_0(%arg0: i32, %arg1: i32) -> (i32, i32) {
    %c0_i32 = arith.constant 0 : i32
    return %arg0, %arg1 : i32, i32
  }
  func.func @transform_1(%arg0: i32, %arg1: i32) -> (i32, i32) {
    %c1_i32 = arith.constant 1 : i32
    %0 = arith.addi %arg1, %c1_i32 : i32
    %c0_i32 = arith.constant 0 : i32
    return %arg0, %0 : i32, i32
  }
  func.func @transform_2(%arg0: i32, %arg1: i32) -> (i32, i32) {
    %c0_i32 = arith.constant 0 : i32
    return %arg0, %arg1 : i32, i32
  }
}

</mosaic_0001>

<llo_original>
// kernel: tpu_custom_call.1
$region0: #{tpu_custom_call.1}
  #allocation0 [shape = 'u32[]', space=smem, size = 0x4, offset = 0x4, fixed_abs, tag = 'smem constant byte address 0x4 - core index']
  #allocation1 [shape = 'u32[72,128]{1,0:T(1,128)}', space=vmem, size = 0x9000, scoped, tag = 'internal scratch']
  %s0 = inlined_call_operand.hbm [shape: f32[16,256], index: 0, kind: input, shape index: {}]
  %s1 = inlined_call_operand.hbm [shape: f32[16,256], index: 1, kind: input, shape index: {}]
  %s2 = inlined_call_operand.hbm [shape: f32[16,128], index: 2, kind: output, shape index: {}]
  %s3 = sld [smem:[#allocation0]]
  $region26: #{tpu_custom_call.1} parent=0
    _
  %s5 = ssub.s32 1, %s3
  %s6 = scalar_select 0, %s5, %s3
  $region1: #{tpu_custom_call.1} parent=0
    #allocation2 [shape = 'u8[8192]{0}', space=vmem, size = 0x2000, scoped, tag = 'input window, operand 0, single buffered']
    #allocation3 [shape = 's32[1]{0}', space=sflag, size = 0x4, scoped, tag = 'scoped memory for tpu_custom_call.1']
    #allocation4 [shape = 's32[1]{0}', space=sflag, size = 0x4, scoped, tag = 'scoped memory for tpu_custom_call.1']
    #allocation5 [shape = 'u8[8192]{0}', space=vmem, size = 0x2000, scoped, tag = 'input window, operand 1, single buffered']
    #allocation6 [shape = 's32[1]{0}', space=sflag, size = 0x4, scoped, tag = 'scoped memory for tpu_custom_call.1']
    #allocation7 [shape = 'u8[8192]{0}', space=vmem, size = 0x2000, scoped, tag = 'output window, operand 0, single buffered']
    %7 = vsyncpa [#allocation3], 0
    %8 = vsyncpa [#allocation6], 0
    %9 = vsyncpa [#allocation4], 0
    // Predicated region
    $region2: #{tpu_custom_call.1} parent=1 // pred_check
      _
    $region3: #{tpu_custom_call.1} parent=1 // pred_check_branch
      %11 = sbr.rel (0) target = $region5
    $region4: #{tpu_custom_call.1} parent=1 // pred_region
      %13 = vsyncadd [#allocation3], 0
      %s14 = sshll.u32 %s0, 4
      %s15 = int_to_ptr.hbm [resolvable:$true] %s14
      %s16 = sshll.u32 [#allocation2], 4
      %s17 = int_to_ptr.vmem [resolvable:$true] %s16
      %22 = dma.hbm_to_vmem [thread:$0]  %s15, 256, %s17, [#allocation3], 256, 128, 8
    $region5: #{tpu_custom_call.1} parent=1 // pred_fallthru
      _
    // Predicated region
    $region6: #{tpu_custom_call.1} parent=1 // pred_check
      _
    $region7: #{tpu_custom_call.1} parent=1 // pred_check_branch
      %24 = sbr.rel (0) target = $region9
    $region8: #{tpu_custom_call.1} parent=1 // pred_region
      %s25 = sadd.s32 0, 1
      %27 = vsyncadd [#allocation6], 0
      %s28 = smul.addr %s25, 8
      %s29 = scalar_lea.hbm %s1, %s28
      %s30 = sshll.u32 %s29, 4
      %s31 = int_to_ptr.hbm [resolvable:$true] %s30
      %s32 = sshll.u32 [#allocation5], 4
      %s33 = int_to_ptr.vmem [resolvable:$true] %s32
      %38 = dma.hbm_to_vmem [thread:$0]  %s31, 256, %s33, [#allocation6], 256, 128, 8
    $region9: #{tpu_custom_call.1} parent=1 // pred_fallthru
      _
    // Predicated region
    $region10: #{tpu_custom_call.1} parent=1 // pred_check
      _
    $region11: #{tpu_custom_call.1} parent=1 // pred_check_branch
      %40 = sbr.rel (0) target = $region13
    $region12: #{tpu_custom_call.1} parent=1 // pred_region
      %42 = dma.done [#allocation3], 256
    $region13: #{tpu_custom_call.1} parent=1 // pred_fallthru
      _
    // Predicated region
    $region14: #{tpu_custom_call.1} parent=1 // pred_check
      _
    $region15: #{tpu_custom_call.1} parent=1 // pred_check_branch
      %44 = sbr.rel (0) target = $region17
    $region16: #{tpu_custom_call.1} parent=1 // pred_region
      %46 = dma.done [#allocation6], 256
    $region17: #{tpu_custom_call.1} parent=1 // pred_fallthru
      _
    %s47 = sadd.s32 0, 1
    %v48 = vld [vmem:[#allocation2] sm:$0xff]
    %v49 = vld [vmem:[#allocation2 + $0x8] sm:$0xff]
    %v50 = vld [vmem:[#allocation5] sm:$0xff]
    %v51 = vld [vmem:[#allocation5 + $0x8] sm:$0xff]
    %v52 = vxor.u32 %v50, 2147483648
    %v53 = vxor.u32 %v51, 2147483648
    %v54 = vmul.f32 %v52, 1.442695
    %v55 = vpow.pop %v54
    %v56 = vmul.f32 %v53, 1.442695
    %v57 = vpow.pop %v56
    %v58 = vadd.f32 %v55, 1.0
    %v59 = vadd.f32 %v57, 1.0
    %v60 = vrcp.pop %v58
    %v61 = vmul.f32 %v58, %v60
    %v62 = vsub.f32 1.0, %v61
    %v63 = vmul.f32 %v60, %v62
    %v64 = vadd.f32 %v60, %v63
    %vm65 = vweird.f32 %v58
    %vm66 = vweird.f32 %v60
    %vm67 = vmor %vm65, %vm66
    %v68 = vsel %vm67, %v60, %v64
    %v69 = vand.u32 2147483647, %v58
    %vm70 = vcmp.eq.f32.partialorder %v69, 8.507059e+37
    %v71 = vand.u32 %v58, 2147483648
    %v72 = vor.u32 1.1754944e-38, %v71
    %v73 = vsel %vm70, %v72, %v68
    %v74 = vmul.f32 1.0, %v73
    %v75 = vrcp.pop %v59
    %v76 = vmul.f32 %v59, %v75
    %v77 = vsub.f32 1.0, %v76
    %v78 = vmul.f32 %v75, %v77
    %v79 = vadd.f32 %v75, %v78
    %vm80 = vweird.f32 %v59
    %vm81 = vweird.f32 %v75
    %vm82 = vmor %vm80, %vm81
    %v83 = vsel %vm82, %v75, %v79
    %v84 = vand.u32 2147483647, %v59
    %vm85 = vcmp.eq.f32.partialorder %v84, 8.507059e+37
    %v86 = vand.u32 %v59, 2147483648
    %v87 = vor.u32 1.1754944e-38, %v86
    %v88 = vsel %vm85, %v87, %v83
    %v89 = vmul.f32 1.0, %v88
    %v90 = vmul.f32 %v50, %v74
    %v91 = vmul.f32 %v51, %v89
    %v92 = vmul.f32 %v48, %v90
    %v93 = vmul.f32 %v49, %v91
    %94 = vst [vmem:[#allocation7] sm:$0xff] %v92
    %95 = vst [vmem:[#allocation7 + $0x8] sm:$0xff] %v93
    // Predicated region
    $region18: #{tpu_custom_call.1} parent=1 // pred_check
      _
    $region19: #{tpu_custom_call.1} parent=1 // pred_check_branch
      %97 = sbr.rel (0) target = $region21
    $region20: #{tpu_custom_call.1} parent=1 // pred_region
      %99 = vsyncadd [#allocation4], 0
      %s100 = sshll.u32 [#allocation7], 4
      %s101 = int_to_ptr.vmem [resolvable:$true] %s100
      %s102 = sshll.u32 %s2, 4
      %s103 = int_to_ptr.hbm [resolvable:$true] %s102
      %108 = dma.vmem_to_hbm [thread:$0]  %s101, 256, %s103, [#allocation4], 128, 128, 8
    $region21: #{tpu_custom_call.1} parent=1 // pred_fallthru
      _
    // Predicated region
    $region22: #{tpu_custom_call.1} parent=1 // pred_check
      _
    $region23: #{tpu_custom_call.1} parent=1 // pred_check_branch
      %110 = sbr.rel (0) target = $region25
    $region24: #{tpu_custom_call.1} parent=1 // pred_region
      %112 = dma.done [#allocation4], 256
    $region25: #{tpu_custom_call.1} parent=1 // pred_fallthru
      _
    %113 = vsyncpa [#allocation3], 1
    %114 = vsyncpa [#allocation6], 1
    %115 = vsyncpa [#allocation4], 1

</llo_original>
